<compile_context>
chip_gen: v6e
topology: v6e:2x2x1
jax: 0.10.0
libtpu: 0.0.40
codegen_flags: <defaults>
</compile_context>

<pallas_src>
import jax
import jax.numpy as jnp
from jax.experimental import pallas as pl
from jax.experimental.pallas import tpu as pltpu


# ------------------------------ small helpers ------------------------------

def _pad_up(v, m):
    return -(-int(v) // int(m)) * int(m)


def _windows(x, KH, KW, TH, WO, stride, dilation):
    """The KH*KW shifted (TH, WO, Cin) windows of the assembled tile."""
    for kh in range(KH):
        for kw in range(KW):
            h0 = kh * dilation
            w0 = kw * dilation
            # TODO(synk): for stride > 1 pre-split the tile into W-phase slabs
            # instead of taking `taps` strided slices (C-minor strided slices
            # can lower to per-tap gather/copy passes).
            yield x[h0:h0 + (TH - 1) * stride + 1:stride,
                    w0:w0 + (WO - 1) * stride + 1:stride, :]


def _assemble_rows(body_ref, halo_ref, halo_rows):
    """Body tile rows extended with the first `halo_rows` rows of the halo tile."""
    # TODO(synk): an overlapping body block (pl.Element / manual clamped DMA)
    # would drop this concat copy and the second input stream entirely.
    x = body_ref[0]                                   # (rows_body, Wp, Cin)
    if halo_rows > 0:
        x = jnp.concatenate([x, halo_ref[0][:halo_rows]], axis=0)
    return x


def _store(out_ref, o, TH, WO, lane_dense):
    o = o.astype(out_ref.dtype)          # cast BEFORE any transpose (halves bytes)
    if lane_dense:
        out_ref[0] = o.T                  # (Cout, TH*WO): full 128-lane rows
    else:
        out_ref[0] = o.reshape(TH, WO, -1)


# ------------------------------ kernel bodies ------------------------------

def _folded_compute(body_ref, halo_ref, wc_ref, out_ref, *, KH, KW, TH, WO,
                    stride, dilation, halo_rows, lane_dense, mxu_dtype):
    """Folded path: depthwise folded into pointwise, ONE im2col MXU matmul.

    wc_ref : (KH*KW*Cin, Cout), row (tap*Cin + ci) = dw[tap, ci] * pw[ci, co].
    """
    x = _assemble_rows(body_ref, halo_ref, halo_rows)
    cin = x.shape[-1]
    cols = [w.reshape(TH * WO, cin)
            for w in _windows(x, KH, KW, TH, WO, stride, dilation)]
    a = jnp.concatenate(cols, axis=-1).astype(mxu_dtype)     # (TH*WO, taps*Cin)
    o = jnp.dot(a, wc_ref[...], preferred_element_type=jnp.float32)
    _store(out_ref, o, TH, WO, lane_dense)


def _dw_compute(body_ref, halo_ref, dw_ref, pw_ref, out_ref, *, KH, KW, TH, WO,
                stride, dilation, halo_rows, lane_dense, mxu_dtype):
    """Large-Cin path: per-tap VPU accumulate in f32, then one pointwise matmul.

    dw_ref : (KH*KW, 1, Cin) f32 depthwise taps.  pw_ref : (Cin, Cout).
    """
    x = _assemble_rows(body_ref, halo_ref, halo_rows)
    cin = x.shape[-1]
    acc = None
    for tap, win in enumerate(_windows(x, KH, KW, TH, WO, stride, dilation)):
        t = win.astype(jnp.float32) * dw_ref[tap]
        acc = t if acc is None else acc + t
    a2 = acc.reshape(TH * WO, cin).astype(mxu_dtype)
    o = jnp.dot(a2, pw_ref[...], preferred_element_type=jnp.float32)
    _store(out_ref, o, TH, WO, lane_dense)


def _make_kernel(fold, use_halo, **static):
    """Build a kernel with the exact arity matching the in_specs we pass."""
    if fold:
        if use_halo:
            def kernel(body_ref, halo_ref, wc_ref, out_ref):
                _folded_compute(body_ref, halo_ref, wc_ref, out_ref, **static)
        else:
            def kernel(body_ref, wc_ref, out_ref):
                _folded_compute(body_ref, None, wc_ref, out_ref, **static)
    else:
        if use_halo:
            def kernel(body_ref, halo_ref, dw_ref, pw_ref, out_ref):
                _dw_compute(body_ref, halo_ref, dw_ref, pw_ref, out_ref, **static)
        else:
            def kernel(body_ref, dw_ref, pw_ref, out_ref):
                _dw_compute(body_ref, None, dw_ref, pw_ref, out_ref, **static)
    return kernel


# --------------------------------- wrapper ---------------------------------

def separable_conv2d_gt(x_nchw, dw_weight, pw_weight, *, kernel_size=3, stride=1,
                        dilation=1):
    """Forward pass of SeparableConv2dgt.

    x_nchw   : (N, Cin, H, W)
    dw_weight: (Cin, 1, KH, KW)   depthwise weight (PyTorch layout, groups=Cin)
    pw_weight: (Cout, Cin, 1, 1)  pointwise weight (PyTorch layout)
    returns  : (N, Cout, Hout, Wout)
    """
    N, Cin, H, W = map(int, x_nchw.shape)
    Cout = int(pw_weight.shape[0])
    KH = KW = kernel_size
    taps = KH * KW
    in_dt = x_nchw.dtype
    itemsize = jnp.dtype(in_dt).itemsize
    sub = {4: 8, 2: 16, 1: 32}.get(itemsize, 8)

    # fixed_padding (same semantics as the PyTorch helper)
    k_eff = kernel_size + (kernel_size - 1) * (dilation - 1)
    pad_total = k_eff - 1
    pad_beg = pad_total // 2
    pad_end = pad_total - pad_beg
    Hp, Wp = H + pad_total, W + pad_total
    Hout = (Hp - k_eff) // stride + 1
    Wout = (Wp - k_eff) // stride + 1

    # Fold depthwise into per-tap pointwise (single im2col MXU matmul) up to
    # Cin<=128 (sweep knob; MXU has large slack on v6e/v7x).
    # NOTE(v7x): the MXU has no int path, so a future int8-weight variant must
    # requantize to fp8 or use the dw path.
    fold = Cin <= 128
    # Keep reference precision: MXU is fed in the input dtype.  Feeding bf16
    # for f32 inputs is a further speedup if the tolerance budget allows.
    mxu_dtype = in_dt

    # ---- generation-aware VMEM policy ----
    try:
        vmem_cap = int(pltpu.get_tpu_info().vmem_capacity_bytes)
    except Exception:
        vmem_cap = 64 * 1024 * 1024                       # conservative (v7x)
    vmem_limit = int(min(max(vmem_cap * 3 // 4, 32 << 20), 112 << 20))
    budget = int(max(vmem_cap // 6, 6 << 20))             # per-tile working set

    lane_cin = _pad_up(Cin, 128)
    lane_cout = _pad_up(Cout, 128)

    def _tile_bytes(th):
        """VMEM footprint estimate with lane/sublane padding and temporaries."""
        rows = (th - 1) * stride + k_eff
        row_b = _pad_up(Wp, sub) * lane_cin * itemsize          # one padded row
        in_b = 2 * 2 * rows * row_b                              # body+halo, dbl-buffered
        cat_b = rows * row_b                                     # assembled-tile copy
        m = th * Wout
        if fold:
            a_b = 2 * _pad_up(m, sub) * _pad_up(taps * Cin, 128) * itemsize  # im2col+temps
            w_b = 2 * _pad_up(taps * Cin, sub) * lane_cout * itemsize
        else:
            a_b = 2 * th * _pad_up(Wout, 8) * lane_cin * 4                   # f32 acc+temp
            w_b = 2 * (taps * 8 * lane_cin * 4 + _pad_up(Cin, sub) * lane_cout * itemsize)
        o_b = _pad_up(m, 8) * lane_cout * 4                                  # f32 result
        out_b = 2 * max(_pad_up(Cout, sub) * _pad_up(m, 128),
                        th * _pad_up(Wout, sub) * lane_cout) * itemsize
        return in_b + cat_b + a_b + w_b + o_b + out_b

    # ---- H tile selection (bounded VMEM; keep >= 2 grid programs if possible) --
    min_tiles = 2 if (N == 1 and Hout >= 2) else 1
    if Hout <= 8:
        tile_h = Hout if min_tiles == 1 else -(-Hout // 2)
    else:
        cap = max(8, _pad_up(-(-Hout // max(2, min_tiles)), 8))
        tile_h = 8
        t = 16
        while t <= cap and _tile_bytes(t) <= budget:
            tile_h = t
            t += 8
    while tile_h > 1 and _tile_bytes(tile_h) > budget:
        tile_h = max(1, tile_h // 2)

    nt = -(-Hout // tile_h)
    halo_rows = max(k_eff - stride, 0) if nt > 1 else 0
    if nt > 1 and halo_rows > tile_h * stride:            # pathological dilation
        tile_h, nt, halo_rows = Hout, 1, 0
    hout_pad = nt * tile_h

    if nt == 1:
        rows_body = (tile_h - 1) * stride + k_eff
        use_halo = False
    else:
        rows_body = tile_h * stride
        use_halo = halo_rows > 0
    if use_halo:
        hb = next(d for d in range(halo_rows, rows_body + 1) if rows_body % d == 0)
    else:
        hb = 0
        halo_rows = 0

    # padded-H extent the block specs may touch (extra bottom rows are zeros)
    hp2 = max(Hp, nt * rows_body + hb)

    # Lane-dense transposed store only when it actually helps: NHWC stores are
    # already unmasked when Cout % 128 == 0, and the transpose only pays off
    # when the flattened spatial extent is itself 128-aligned.
    lane_dense = (Cout % 128 != 0) and ((tile_h * Wout) % 128 == 0)

    # ---- layout plumbing (NCHW -> padded NHWC) ----
    # TODO(synk): this relayout + pad is one extra HBM pass over the activation;
    # removing it needs an NHWC producer upstream or an in-kernel clamped-DMA
    # zero-fill path.
    x_nhwc = jnp.transpose(x_nchw, (0, 2, 3, 1))
    x_pad = jnp.pad(x_nhwc, ((0, 0), (pad_beg, pad_end + hp2 - Hp),
                             (pad_beg, pad_end), (0, 0)))

    dwt = jnp.transpose(dw_weight[:, 0, :, :], (1, 2, 0)).reshape(taps, Cin)  # (taps,Cin)
    pwt = jnp.transpose(pw_weight[:, :, 0, 0], (1, 0))                        # (Cin,Cout)

    # ---- block specs / args ----
    body_spec = pl.BlockSpec((1, rows_body, Wp, Cin), lambda n, ti: (n, ti, 0, 0))
    in_specs = [body_spec]
    args = [x_pad]
    if use_halo:
        hmul = rows_body // hb
        in_specs.append(pl.BlockSpec((1, hb, Wp, Cin),
                                     lambda n, ti: (n, (ti + 1) * hmul, 0, 0)))
        args.append(x_pad)

    static = dict(KH=KH, KW=KW, TH=tile_h, WO=Wout, stride=stride,
                  dilation=dilation, halo_rows=halo_rows,
                  lane_dense=lane_dense, mxu_dtype=mxu_dtype)

    if fold:
        # wc[tap*Cin + ci, co] = dw[tap, ci] * pw[ci, co]  (K = taps*Cin)
        wc = (dwt.astype(jnp.float32)[:, :, None] *
              pwt.astype(jnp.float32)[None, :, :]).reshape(taps * Cin, Cout)
        wc = wc.astype(mxu_dtype)
        in_specs.append(pl.BlockSpec((taps * Cin, Cout), lambda n, ti: (0, 0)))
        args.append(wc)
        flops = 2 * N * Hout * Wout * taps * Cin * Cout
        wbytes = taps * Cin * Cout * itemsize
    else:
        dwk = dwt.reshape(taps, 1, Cin).astype(jnp.float32)
        pwk = pwt.astype(mxu_dtype)
        in_specs.append(pl.BlockSpec((taps, 1, Cin), lambda n, ti: (0, 0, 0)))
        in_specs.append(pl.BlockSpec((Cin, Cout), lambda n, ti: (0, 0)))
        args.extend([dwk, pwk])
        flops = 2 * N * Hout * Wout * Cin * (taps + Cout)
        wbytes = taps * Cin * 4 + Cin * Cout * itemsize

    kernel = _make_kernel(fold, use_halo, **static)

    if lane_dense:
        out_shape = jax.ShapeDtypeStruct((N, Cout, hout_pad * Wout), in_dt)
        out_spec = pl.BlockSpec((1, Cout, tile_h * Wout), lambda n, ti: (n, 0, ti))
    else:
        out_shape = jax.ShapeDtypeStruct((N, hout_pad, Wout, Cout), in_dt)
        out_spec = pl.BlockSpec((1, tile_h, Wout, Cout), lambda n, ti: (n, ti, 0, 0))

    cost = pl.CostEstimate(
        flops=int(flops),
        transcendentals=0,
        bytes_accessed=int(x_pad.size * itemsize + wbytes
                           + N * Hout * Wout * Cout * itemsize))

    out = pl.pallas_call(
        kernel,
        out_shape=out_shape,
        grid_spec=pltpu.PrefetchScalarGridSpec(
            num_scalar_prefetch=0,
            grid=(N, nt),
            in_specs=in_specs,
            out_specs=out_spec),
        compiler_params=pltpu.CompilerParams(
            dimension_semantics=("parallel", "parallel"),
            vmem_limit_bytes=vmem_limit),
        cost_estimate=cost,
    )(*args)

    if lane_dense:
        return out[:, :, :Hout * Wout].reshape(N, Cout, Hout, Wout)  # already NCHW
    out = out[:, :Hout]
    return jnp.transpose(out, (0, 3, 1, 2))


# ------------------------------ pure-JAX reference ------------------------------

def _reference(x_nchw, dw_weight, pw_weight, kernel_size=3, stride=1, dilation=1):
    """lax-conv reference replicating the PyTorch forward."""
    k_eff = kernel_size + (kernel_size - 1) * (dilation - 1)
    pad_total = k_eff - 1
    pad_beg = pad_total // 2
    pad_end = pad_total - pad_beg
    xp = jnp.pad(x_nchw, ((0, 0), (0, 0), (pad_beg, pad_end), (pad_beg, pad_end)))
    Cin = x_nchw.shape[1]
    dw_out = jax.lax.conv_general_dilated(
        xp, dw_weight, window_strides=(stride, stride), padding="VALID",
        rhs_dilation=(dilation, dilation), feature_group_count=Cin,
        dimension_numbers=("NCHW", "OIHW", "NCHW"),
        precision=jax.lax.Precision.HIGHEST)
    return jax.lax.conv_general_dilated(
        dw_out, pw_weight, window_strides=(1, 1), padding="VALID",
        dimension_numbers=("NCHW", "OIHW", "NCHW"),
        precision=jax.lax.Precision.HIGHEST)


if __name__ == "__main__":
    key = jax.random.PRNGKey(0)
    kx, kw1, kw2, kx2, kw3, kw4, kx3, kw5, kw6 = jax.random.split(key, 9)

    # --- module-faithful config: _init_weight fills all conv weights with 1 ---
    N, Cin, H, W, Cout = 2, 4, 16, 16, 8
    ksz, stride, dilation = 3, 1, 1
    x = jax.random.normal(kx, (N, Cin, H, W), dtype=jnp.float32)
    dw_w = jnp.ones((Cin, 1, ksz, ksz), dtype=jnp.float32)
    pw_w = jnp.ones((Cout, Cin, 1, 1), dtype=jnp.float32)

    out = separable_conv2d_gt(x, dw_w, pw_w, kernel_size=ksz, stride=stride,
                              dilation=dilation)
    out = jax.block_until_ready(out)
    ref = _reference(x, dw_w, pw_w, ksz, stride, dilation)
    assert out.shape == ref.shape == (N, Cout, H, W), (out.shape, ref.shape)
    assert jnp.allclose(out, ref, atol=1e-3, rtol=1e-3), "mismatch (ones weights)"

    # --- random weights: exercise the folded im2col path (tiny Cin) ---
    dw_r = jax.random.normal(kw1, (Cin, 1, ksz, ksz), dtype=jnp.float32)
    pw_r = jax.random.normal(kw2, (Cout, Cin, 1, 1), dtype=jnp.float32)
    out_r = jax.block_until_ready(separable_conv2d_gt(x, dw_r, pw_r))
    ref_r = _reference(x, dw_r, pw_r)
    assert jnp.allclose(out_r, ref_r, atol=1e-3, rtol=1e-3), "mismatch (folded path)"

    # --- Cin=128: folded im2col path with K=1152, N==1 grid split into 2 tiles ---
    N2, Cin2, H2, W2, Cout2 = 1, 128, 16, 16, 32
    x2 = jax.random.normal(kx2, (N2, Cin2, H2, W2), dtype=jnp.float32)
    dw2 = jax.random.normal(kw3, (Cin2, 1, ksz, ksz), dtype=jnp.float32) * 0.1
    pw2 = jax.random.normal(kw4, (Cout2, Cin2, 1, 1), dtype=jnp.float32) * 0.1
    out2 = jax.block_until_ready(separable_conv2d_gt(x2, dw2, pw2))
    ref2 = _reference(x2, dw2, pw2)
    assert jnp.allclose(out2, ref2, atol=1e-3, rtol=1e-3), "mismatch (Cin=128 folded)"

    # --- Cin=256: large-Cin dw path (f32 VPU depthwise + pointwise MXU, NHWC store) ---
    N3, Cin3, H3, W3, Cout3 = 1, 256, 8, 8, 64
    x3 = jax.random.normal(kx3, (N3, Cin3, H3, W3), dtype=jnp.float32)
    dw3 = jax.random.normal(kw5, (Cin3, 1, ksz, ksz), dtype=jnp.float32) * 0.1
    pw3 = jax.random.normal(kw6, (Cout3, Cin3, 1, 1), dtype=jnp.float32) * 0.1
    out3 = jax.block_until_ready(separable_conv2d_gt(x3, dw3, pw3))
    ref3 = _reference(x3, dw3, pw3)
    assert jnp.allclose(out3, ref3, atol=1e-3, rtol=1e-3), "mismatch (large-Cin path)"

    print("KERNEL_OK")
</pallas_src>

<mosaic_0001>
module attributes {stable_mosaic.version = 11 : i64} {
  func.func @kernel(%arg0: i32, %arg1: i32, %arg2: memref<1x8x18x4xf32, #tpu.memory_space<vmem>>, %arg3: memref<1x2x18x4xf32, #tpu.memory_space<vmem>>, %arg4: memref<36x8xf32, #tpu.memory_space<vmem>>, %arg5: memref<1x8x128xf32, #tpu.memory_space<vmem>>) attributes {dimension_semantics = [#tpu.dimension_semantics<parallel>, #tpu.dimension_semantics<parallel>], iteration_bounds = array<i64: 2, 2>, scalar_prefetch = 0 : i64, scratch_operands = 0 : i64, tpu.core_type = #tpu.core_type<tc>, window_params = [{transform_indices = @transform_0, window_bounds = array<i64: 1, 8, 18, 4>}, {transform_indices = @transform_1, window_bounds = array<i64: 1, 2, 18, 4>}, {pipeline_mode = #tpu.pipeline_mode<synchronous>, transform_indices = @transform_2, window_bounds = array<i64: 36, 8>}, {transform_indices = @transform_3, window_bounds = array<i64: 1, 8, 128>}]} {
    %c0 = arith.constant 0 : index
    %c0_0 = arith.constant 0 : index
    %c0_1 = arith.constant 0 : index
    %c0_2 = arith.constant 0 : index
    %0 = vector.load %arg2[%c0, %c0_0, %c0_1, %c0_2] : memref<1x8x18x4xf32, #tpu.memory_space<vmem>>, vector<1x8x18x4xf32>
    %1 = vector.shape_cast %0 : vector<1x8x18x4xf32> to vector<8x18x4xf32>
    %c0_3 = arith.constant 0 : index
    %c0_4 = arith.constant 0 : index
    %c0_5 = arith.constant 0 : index
    %c0_6 = arith.constant 0 : index
    %2 = vector.load %arg3[%c0_3, %c0_4, %c0_5, %c0_6] : memref<1x2x18x4xf32, #tpu.memory_space<vmem>>, vector<1x2x18x4xf32>
    %3 = vector.shape_cast %2 : vector<1x2x18x4xf32> to vector<2x18x4xf32>
    %4 = tpu.concatenate %1, %3 in 0 : vector<8x18x4xf32>, vector<2x18x4xf32> -> vector<10x18x4xf32>
    %5 = vector.extract_strided_slice %4 {offsets = [0, 0, 0], sizes = [8, 16, 4], strides = [1, 1, 1]} : vector<10x18x4xf32> to vector<8x16x4xf32>
    %6 = vector.shape_cast %5 : vector<8x16x4xf32> to vector<128x4xf32>
    %7 = vector.extract_strided_slice %4 {offsets = [0, 1, 0], sizes = [8, 16, 4], strides = [1, 1, 1]} : vector<10x18x4xf32> to vector<8x16x4xf32>
    %8 = vector.shape_cast %7 : vector<8x16x4xf32> to vector<128x4xf32>
    %9 = vector.extract_strided_slice %4 {offsets = [0, 2, 0], sizes = [8, 16, 4], strides = [1, 1, 1]} : vector<10x18x4xf32> to vector<8x16x4xf32>
    %10 = vector.shape_cast %9 : vector<8x16x4xf32> to vector<128x4xf32>
    %11 = vector.extract_strided_slice %4 {offsets = [1, 0, 0], sizes = [8, 16, 4], strides = [1, 1, 1]} : vector<10x18x4xf32> to vector<8x16x4xf32>
    %12 = vector.shape_cast %11 : vector<8x16x4xf32> to vector<128x4xf32>
    %13 = vector.extract_strided_slice %4 {offsets = [1, 1, 0], sizes = [8, 16, 4], strides = [1, 1, 1]} : vector<10x18x4xf32> to vector<8x16x4xf32>
    %14 = vector.shape_cast %13 : vector<8x16x4xf32> to vector<128x4xf32>
    %15 = vector.extract_strided_slice %4 {offsets = [1, 2, 0], sizes = [8, 16, 4], strides = [1, 1, 1]} : vector<10x18x4xf32> to vector<8x16x4xf32>
    %16 = vector.shape_cast %15 : vector<8x16x4xf32> to vector<128x4xf32>
    %17 = vector.extract_strided_slice %4 {offsets = [2, 0, 0], sizes = [8, 16, 4], strides = [1, 1, 1]} : vector<10x18x4xf32> to vector<8x16x4xf32>
    %18 = vector.shape_cast %17 : vector<8x16x4xf32> to vector<128x4xf32>
    %19 = vector.extract_strided_slice %4 {offsets = [2, 1, 0], sizes = [8, 16, 4], strides = [1, 1, 1]} : vector<10x18x4xf32> to vector<8x16x4xf32>
    %20 = vector.shape_cast %19 : vector<8x16x4xf32> to vector<128x4xf32>
    %21 = vector.extract_strided_slice %4 {offsets = [2, 2, 0], sizes = [8, 16, 4], strides = [1, 1, 1]} : vector<10x18x4xf32> to vector<8x16x4xf32>
    %22 = vector.shape_cast %21 : vector<8x16x4xf32> to vector<128x4xf32>
    %23 = tpu.concatenate %6, %8, %10, %12, %14, %16, %18, %20, %22 in 1 : vector<128x4xf32>, vector<128x4xf32>, vector<128x4xf32>, vector<128x4xf32>, vector<128x4xf32>, vector<128x4xf32>, vector<128x4xf32>, vector<128x4xf32>, vector<128x4xf32> -> vector<128x36xf32>
    %c0_7 = arith.constant 0 : index
    %c0_8 = arith.constant 0 : index
    %24 = vector.load %arg4[%c0_7, %c0_8] : memref<36x8xf32, #tpu.memory_space<vmem>>, vector<36x8xf32>
    %cst = arith.constant dense<0.000000e+00> : vector<128x8xf32>
    %25 = tpu.matmul %23, %24, %cst {dimension_numbers = #tpu.dot_dimension_numbers<[1], [0], [0], [1], [0, 0, 1, 1], [], []>} : vector<128x36xf32>, vector<36x8xf32>, vector<128x8xf32> -> vector<128x8xf32>
    %26 = tpu.transpose %25, [1, 0] : vector<128x8xf32> -> vector<8x128xf32>
    %c0_9 = arith.constant 0 : index
    %c0_10 = arith.constant 0 : index
    %c0_11 = arith.constant 0 : index
    %27 = vector.load %arg5[%c0_9, %c0_10, %c0_11] : memref<1x8x128xf32, #tpu.memory_space<vmem>>, vector<1x8x128xf32>
    %28 = vector.shape_cast %27 : vector<1x8x128xf32> to vector<8x128xf32>
    %29 = vector.shape_cast %26 : vector<8x128xf32> to vector<1x8x128xf32>
    tpu.vector_store %arg5[%c0_9, %c0_10, %c0_11], %29 {strides = array<i32>} : memref<1x8x128xf32, #tpu.memory_space<vmem>>, vector<1x8x128xf32>,
    return
  }
  func.func @transform_0(%arg0: i32, %arg1: i32) -> (i32, i32, i32, i32) {
    %c0_i32 = arith.constant 0 : i32
    %c0_i32_0 = arith.constant 0 : i32
    %c0_i32_1 = arith.constant 0 : i32
    return %arg0, %arg1, %c0_i32, %c0_i32_0 : i32, i32, i32, i32
  }
  func.func @transform_1(%arg0: i32, %arg1: i32) -> (i32, i32, i32, i32) {
    %c1_i32 = arith.constant 1 : i32
    %0 = arith.addi %arg1, %c1_i32 : i32
    %c4_i32 = arith.constant 4 : i32
    %1 = arith.muli %0, %c4_i32 : i32
    %c0_i32 = arith.constant 0 : i32
    %c0_i32_0 = arith.constant 0 : i32
    %c0_i32_1 = arith.constant 0 : i32
    return %arg0, %1, %c0_i32, %c0_i32_0 : i32, i32, i32, i32
  }
  func.func @transform_2(%arg0: i32, %arg1: i32) -> (i32, i32) {
    %c0_i32 = arith.constant 0 : i32
    %c0_i32_0 = arith.constant 0 : i32
    %c0_i32_1 = arith.constant 0 : i32
    return %c0_i32, %c0_i32_0 : i32, i32
  }
  func.func @transform_3(%arg0: i32, %arg1: i32) -> (i32, i32, i32) {
    %c0_i32 = arith.constant 0 : i32
    %c0_i32_0 = arith.constant 0 : i32
    return %arg0, %c0_i32, %arg1 : i32, i32, i32
  }
}

</mosaic_0001>

<llo_original>
// kernel: tpu_custom_call.1
$region0: #{tpu_custom_call.1}
  #allocation0 [shape = 'u32[]', space=smem, size = 0x4, offset = 0x4, fixed_abs, tag = 'smem constant byte address 0x4 - core index']
  #allocation1 [shape = 'u32[144,128]{1,0:T(1,128)}', space=vmem, size = 0x12000, scoped, tag = 'internal scratch']
  %s0 = inlined_call_operand.vmem [shape: f32[2,18,18,4], index: 0, kind: input, shape index: {}]
  %s1 = inlined_call_operand.vmem [shape: f32[2,18,18,4], index: 1, kind: input, shape index: {}]
  %s2 = inlined_call_operand.vmem [shape: f32[36,8], index: 2, kind: input, shape index: {}]
  %s3 = inlined_call_operand.hbm [shape: f32[2,8,256], index: 3, kind: output, shape index: {}]
  %s4 = sld [smem:[#allocation0]]
  $region45: #{tpu_custom_call.1} parent=0
    _
  %s6 = ssub.s32 1, %s4
  %s7 = scalar_select 0, %s6, %s4
  $region1: #{tpu_custom_call.1} parent=0
    #allocation2 [shape = 'u8[8192]{0}', space=vmem, size = 0x2000, scoped, tag = 'output window, operand 0']
    #allocation3 [shape = 's32[2]{0}', space=sflag, size = 0x8, scoped, tag = 'scoped memory for tpu_custom_call.1']
    %8 = vsyncpa [#allocation3], 0
    %s9 = scalar_lea.sflag [#allocation3], 1
    %10 = vsyncpa %s9, 0
    loop: start=0, step=1, limit=6
    $region2: #{tpu_custom_call.1} parent=1 // loop_pre_header
      _
    $region3: #{tpu_custom_call.1} parent=1 // loop_header
      %s12 = sphi 0, %s16
      %p13 = scmp.ge.s32.totalorder %s12, 6
      %s19 = sphi 0, %s31
      %s20 = sphi 0, %s27
      %s21 = sphi 0, %s19
      %s22 = sphi 0, %s20
      %s23 = sphi 0, %s21
      %s24 = sphi 0, %s22
      %s36 = sphi 0, %s38
      %s39 = sphi 0, %s36
      %s40 = sphi 0, %s39
      %s56 = sphi 0, %s40
      %s68 = sphi 0, %s70
      %s71 = sphi 0, %s68
      %s72 = sphi 0, %s71
      %s88 = sphi 0, %s72
      %s92 = sphi 0, %s92
      %s94 = sphi 0, %s92
      %s95 = sphi 0, %s94
      %s109 = sphi 0, %s95
      %s117 = sphi 0, %s119
      %s120 = sphi 0, %s117
      %s121 = sphi 0, %s120
      %s137 = sphi 0, %s121
    $region4: #{tpu_custom_call.1} parent=1 // loop_header_branch
      %15 = sbr.rel (%p13) target = $region8
    $region5: #{tpu_custom_call.1} parent=1 // loop_body
      %s17 = ssub.s32 %s12, 1
      %s18 = ssub.s32 %s12, 2
      %s25 = sadd.s32 1, %s20
      %p26 = scmp.ge.s32.totalorder %s25, 2
      %s27 = scalar_select %p26, 0, %s25
      %s28 = sadd.s32 1, %s19
      %s29 = scalar_select %p26, %s28, %s19
      %p30 = scmp.ge.s32.totalorder %s29, 2
      %s31 = scalar_select %p30, 0, %s29
      %s32 = ssub.s32 %s19, %s31
      %s33 = ssub.s32 %s20, %s27
      %s34 = sor.u32 %s32, %s33
      %p35 = scmp.eq.s32.totalorder %s34, 0
      %s37 = sadd.s32 %s36, 1
      %s38 = scalar_select %p35, %s36, %s37
      %p41 = pneg %p35
      %p42 = scmp.eq.s32.totalorder %s12, 3
      %p43 = por %p41, %p42
      %p44 = scmp.ne.s32.totalorder %s36, %s39
      %p45 = scmp.eq.s32.totalorder %s12, 0
      %p46 = por %p44, %p45
      %p47 = scmp.ne.s32.totalorder %s36, %s39
      %p48 = scmp.eq.s32.totalorder %s17, 3
      %p49 = por %p47, %p48
      %p50 = scmp.ne.s32.totalorder %s39, %s40
      %p51 = scmp.eq.s32.totalorder %s17, 0
      %p52 = por %p50, %p51
      %p53 = scmp.ne.s32.totalorder %s39, %s40
      %p54 = scmp.eq.s32.totalorder %s18, 3
      %p55 = por %p53, %p54
      %p57 = scmp.ne.s32.totalorder %s40, %s56
      %p58 = scmp.eq.s32.totalorder %s18, 0
      %p59 = por %p57, %p58
      %s60 = sadd.s32 %s20, 1
      %s61 = smul.u32 %s60, 4
      %s62 = sadd.s32 %s27, 1
      %s63 = smul.u32 %s62, 4
      %s64 = ssub.s32 %s19, %s31
      %s65 = ssub.s32 %s61, %s63
      %s66 = sor.u32 %s64, %s65
      %p67 = scmp.eq.s32.totalorder %s66, 0
      %s69 = sadd.s32 %s68, 1
      %s70 = scalar_select %p67, %s68, %s69
      %p73 = pneg %p67
      %p74 = scmp.eq.s32.totalorder %s12, 3
      %p75 = por %p73, %p74
      %p76 = scmp.ne.s32.totalorder %s68, %s71
      %p77 = scmp.eq.s32.totalorder %s12, 0
      %p78 = por %p76, %p77
      %p79 = scmp.ne.s32.totalorder %s68, %s71
      %p80 = scmp.eq.s32.totalorder %s17, 3
      %p81 = por %p79, %p80
      %p82 = scmp.ne.s32.totalorder %s71, %s72
      %p83 = scmp.eq.s32.totalorder %s17, 0
      %p84 = por %p82, %p83
      %p85 = scmp.ne.s32.totalorder %s71, %s72
      %p86 = scmp.eq.s32.totalorder %s18, 3
      %p87 = por %p85, %p86
      %p89 = scmp.ne.s32.totalorder %s72, %s88
      %p90 = scmp.eq.s32.totalorder %s18, 0
      %p91 = por %p89, %p90
      %s93 = sadd.s32 %s92, 1
      %p96 = scmp.eq.s32.totalorder %s12, 3
      %p97 = scmp.ne.s32.totalorder %s92, %s94
      %p98 = scmp.eq.s32.totalorder %s12, 0
      %p99 = por %p97, %p98
      %p100 = scmp.ne.s32.totalorder %s92, %s94
      %p101 = scmp.eq.s32.totalorder %s17, 3
      %p102 = por %p100, %p101
      %p103 = scmp.ne.s32.totalorder %s94, %s95
      %p104 = scmp.eq.s32.totalorder %s17, 0
      %p105 = por %p103, %p104
      %p106 = scmp.ne.s32.totalorder %s94, %s95
      %p107 = scmp.eq.s32.totalorder %s18, 3
      %p108 = por %p106, %p107
      %p110 = scmp.ne.s32.totalorder %s95, %s109
      %p111 = scmp.eq.s32.totalorder %s18, 0
      %p112 = por %p110, %p111
      %s113 = ssub.s32 %s19, %s31
      %s114 = ssub.s32 %s20, %s27
      %s115 = sor.u32 %s113, %s114
      %p116 = scmp.eq.s32.totalorder %s115, 0
      %s118 = sadd.s32 %s117, 1
      %s119 = scalar_select %p116, %s117, %s118
      %p122 = pneg %p116
      %p123 = scmp.eq.s32.totalorder %s12, 3
      %p124 = por %p122, %p123
      %p125 = scmp.ne.s32.totalorder %s117, %s120
      %p126 = scmp.eq.s32.totalorder %s12, 0
      %p127 = por %p125, %p126
      %p128 = scmp.ne.s32.totalorder %s117, %s120
      %p129 = scmp.eq.s32.totalorder %s17, 3
      %p130 = por %p128, %p129
      %p131 = scmp.ne.s32.totalorder %s120, %s121
      %p132 = scmp.eq.s32.totalorder %s17, 0
      %p133 = por %p131, %p132
      %p134 = scmp.ne.s32.totalorder %s120, %s121
      %p135 = scmp.eq.s32.totalorder %s18, 3
      %p136 = por %p134, %p135
      %p138 = scmp.ne.s32.totalorder %s121, %s137
      %p139 = scmp.eq.s32.totalorder %s18, 0
      %p140 = por %p138, %p139
      %p141 = scmp.le.s32.totalorder 1, %s12
      %p142 = scmp.lt.s32.totalorder %s12, 5
      %p143 = pnand %p141, %p142
      %p144 = pneg %p143
      // Predicated region
      $region9: #{tpu_custom_call.1} parent=5 // pred_check
        _
      $region10: #{tpu_custom_call.1} parent=5 // pred_check_branch
        %146 = sbr.rel (%p143) target = $region12
      $region11: #{tpu_custom_call.1} parent=5 // pred_region
        %s147 = ssub.s32 %s12, 1
        // Predicated region
        $region13: #{tpu_custom_call.1} parent=11 // pred_check
          %p148 = pneg %p105
        $region14: #{tpu_custom_call.1} parent=11 // pred_check_branch
          %150 = sbr.rel (%p148) target = $region16
        $region15: #{tpu_custom_call.1} parent=11 // pred_region
          _
        $region16: #{tpu_custom_call.1} parent=11 // pred_fallthru
          _
      $region12: #{tpu_custom_call.1} parent=5 // pred_fallthru
        _
      %p151 = scmp.lt.s32.totalorder %s12, 4
      // Predicated region
      $region17: #{tpu_custom_call.1} parent=5 // pred_check
        %p152 = pneg %p151
      $region18: #{tpu_custom_call.1} parent=5 // pred_check_branch
        %154 = sbr.rel (%p152) target = $region20
      $region19: #{tpu_custom_call.1} parent=5 // pred_region
        // Predicated region
        $region21: #{tpu_custom_call.1} parent=19 // pred_check
          %p155 = pneg %p46
        $region22: #{tpu_custom_call.1} parent=19 // pred_check_branch
          %157 = sbr.rel (%p155) target = $region24
        $region23: #{tpu_custom_call.1} parent=19 // pred_region
          %s158 = smul.u32 8, %s20
          %s159 = ssub.s32 18, %s158
          %p160 = scmp.lt.s32.totalorder %s159, 8
          %s161 = scalar_select %p160, %s159, 8
          %s162 = smul.u32 128, %s161
          %s163 = smul.u32 %s162, 3
          %p164 = scmp.lt.s32.totalorder %s19, 1
          %s165 = scalar_select %p164, %s19, 1
          %p166 = scmp.lt.s32.totalorder %s158, 17
          %s167 = scalar_select %p166, %s158, 17
          %s168 = smul.addr %s167, 3
          %s169 = smul.addr %s165, 54
          %s170 = sadd.s32 %s168, %s169
          %s171 = smul.addr %s170, 8
          %s172 = scalar_lea.vmem %s0, %s171
          %s173 = smul.u32 8, %s20
          %s174 = ssub.s32 18, %s173
          %p175 = scmp.lt.s32.totalorder %s174, 8
          %s176 = scalar_select %p175, %s174, 8
          %s177 = smul.u32 128, %s176
          %s178 = smul.u32 %s177, 3
        $region24: #{tpu_custom_call.1} parent=19 // pred_fallthru
          _
        // Predicated region
        $region25: #{tpu_custom_call.1} parent=19 // pred_check
          %p179 = pneg %p78
        $region26: #{tpu_custom_call.1} parent=19 // pred_check_branch
          %181 = sbr.rel (%p179) target = $region28
        $region27: #{tpu_custom_call.1} parent=19 // pred_region
          %s182 = sadd.s32 %s20, 1
          %s183 = smul.u32 %s182, 4
          %s184 = smul.u32 2, %s183
          %p185 = scmp.lt.s32.totalorder %s19, 1
          %s186 = scalar_select %p185, %s19, 1
          %p187 = scmp.lt.s32.totalorder %s184, 17
          %s188 = scalar_select %p187, %s184, 17
          %s189 = smul.addr %s188, 3
          %s190 = smul.addr %s186, 54
          %s191 = sadd.s32 %s189, %s190
          %s192 = smul.addr %s191, 8
          %s193 = scalar_lea.vmem %s1, %s192
          %s194 = sadd.s32 %s20, 1
          %s195 = smul.u32 %s194, 4
          %s196 = smul.u32 2, %s195
        $region28: #{tpu_custom_call.1} parent=19 // pred_fallthru
          _
      $region20: #{tpu_custom_call.1} parent=5 // pred_fallthru
        _
      %p197 = scmp.le.s32.totalorder 1, %s12
      %p198 = scmp.lt.s32.totalorder %s12, 5
      %p199 = pnand %p197, %p198
      %p200 = pneg %p199
      // Predicated region
      $region29: #{tpu_custom_call.1} parent=5 // pred_check
        _
      $region30: #{tpu_custom_call.1} parent=5 // pred_check_branch
        %202 = sbr.rel (%p199) target = $region32
      $region31: #{tpu_custom_call.1} parent=5 // pred_region
        %s203 = ssub.s32 %s12, 1
        %s204 = smul.u32 8, %s22
        %s205 = ssub.s32 18, %s204
        %p206 = scmp.lt.s32.totalorder %s205, 8
        %s207 = scalar_select %p206, %s205, 8
        %s208 = smul.u32 128, %s207
        %s209 = smul.u32 %s208, 3
        %p210 = scmp.lt.s32.totalorder %s21, 1
        %s211 = scalar_select %p210, %s21, 1
        %p212 = scmp.lt.s32.totalorder %s204, 17
        %s213 = scalar_select %p212, %s204, 17
        %s214 = smul.addr %s213, 3
        %s215 = smul.addr %s211, 54
        %s216 = sadd.s32 %s214, %s215
        %s217 = smul.addr %s216, 8
        %s218 = scalar_lea.vmem %s0, %s217
        %p219 = pneg %p52
        %p220 = pneg %p49
        %s221 = sadd.s32 %s22, 1
        %s222 = smul.u32 %s221, 4
        %s223 = smul.u32 2, %s222
        %p224 = scmp.lt.s32.totalorder %s21, 1
        %s225 = scalar_select %p224, %s21, 1
        %p226 = scmp.lt.s32.totalorder %s223, 17
        %s227 = scalar_select %p226, %s223, 17
        %s228 = smul.addr %s227, 3
        %s229 = smul.addr %s225, 54
        %s230 = sadd.s32 %s228, %s229
        %s231 = smul.addr %s230, 8
        %s232 = scalar_lea.vmem %s1, %s231
        %p233 = pneg %p84
        %p234 = pneg %p81
        %p235 = pneg %p105
        %p236 = pneg %p102
        %p237 = pneg %p133
        %p238 = pneg %p130
        %s239 = sand.u32 %s120, 1
        %s240 = scalar_lea.sflag [#allocation3], %s239
        %s241 = sand.u32 %s120, 1
        %s242 = smul.addr %s241, 8
        %s243 = scalar_lea.vmem [#allocation2], %s242
        %s244 = smul.u32 8, %s22
        %s245 = ssub.s32 18, %s244
        %p246 = scmp.lt.s32.totalorder %s245, 8
        %s247 = scalar_select %p246, %s245, 8
        %s248 = smul.u32 128, %s247
        %s249 = smul.u32 %s248, 3
        %p250 = scmp.lt.s32.totalorder %s21, 1
        %s251 = scalar_select %p250, %s21, 1
        %p252 = scmp.lt.s32.totalorder %s244, 17
        %s253 = scalar_select %p252, %s244, 17
        %s254 = smul.addr %s253, 3
        %s255 = smul.addr %s251, 54
        %s256 = sadd.s32 %s254, %s255
        %s257 = smul.addr %s256, 8
        %s258 = scalar_lea.vmem %s0, %s257
        %s259 = smul.u32 8, %s22
        %s260 = ssub.s32 18, %s259
        %p261 = scmp.lt.s32.totalorder %s260, 8
        %s262 = scalar_select %p261, %s260, 8
        %s263 = smul.u32 128, %s262
        %s264 = smul.u32 %s263, 3
        %s265 = sadd.s32 %s22, 1
        %s266 = smul.u32 %s265, 4
        %s267 = smul.u32 2, %s266
        %p268 = scmp.lt.s32.totalorder %s21, 1
        %s269 = scalar_select %p268, %s21, 1
        %p270 = scmp.lt.s32.totalorder %s267, 17
        %s271 = scalar_select %p270, %s267, 17
        %s272 = smul.addr %s271, 3
        %s273 = smul.addr %s269, 54
        %s274 = sadd.s32 %s272, %s273
        %s275 = smul.addr %s274, 8
        %s276 = scalar_lea.vmem %s1, %s275
        %s277 = sadd.s32 %s22, 1
        %s278 = smul.u32 %s277, 4
        %s279 = smul.u32 2, %s278
        %v280 = vld [vmem:[%s258] sm:$0xff]
        %v281 = vld [vmem:[%s258 + $0x8] sm:$0xff]
        %v282 = vld [vmem:[%s258 + $0x10] sm:$0x3]
        %v283 = vld [vmem:[%s258 + $0x18] sm:$0xff]
        %v284 = vld [vmem:[%s258 + $0x20] sm:$0xff]
        %v285 = vld [vmem:[%s258 + $0x28] sm:$0x3]
        %v286 = vld [vmem:[%s258 + $0x30] sm:$0xff]
        %v287 = vld [vmem:[%s258 + $0x38] sm:$0xff]
        %v288 = vld [vmem:[%s258 + $0x40] sm:$0x3]
        %v289 = vld [vmem:[%s258 + $0x48] sm:$0xff]
        %v290 = vld [vmem:[%s258 + $0x50] sm:$0xff]
        %v291 = vld [vmem:[%s258 + $0x58] sm:$0x3]
        %v292 = vld [vmem:[%s258 + $0x60] sm:$0xff]
        %v293 = vld [vmem:[%s258 + $0x68] sm:$0xff]
        %v294 = vld [vmem:[%s258 + $0x70] sm:$0x3]
        %v295 = vld [vmem:[%s258 + $0x78] sm:$0xff]
        %v296 = vld [vmem:[%s258 + $0x80] sm:$0xff]
        %v297 = vld [vmem:[%s258 + $0x88] sm:$0x3]
        %v298 = vld [vmem:[%s258 + $0x90] sm:$0xff]
        %v299 = vld [vmem:[%s258 + $0x98] sm:$0xff]
        %v300 = vld [vmem:[%s258 + $0xa0] sm:$0x3]
        %v301 = vld [vmem:[%s258 + $0xa8] sm:$0xff]
        %v302 = vld [vmem:[%s258 + $0xb0] sm:$0xff]
        %v303 = vld [vmem:[%s258 + $0xb8] sm:$0x3]
        %v304 = vld [vmem:[%s276] sm:$0xff]
        %v305 = vld [vmem:[%s276 + $0x8] sm:$0xff]
        %v306 = vld [vmem:[%s276 + $0x10] sm:$0x3]
        %v307 = vld [vmem:[%s276 + $0x18] sm:$0xff]
        %v308 = vld [vmem:[%s276 + $0x20] sm:$0xff]
        %v309 = vld [vmem:[%s276 + $0x28] sm:$0x3]
        %vm334 = vcmask 1046528
        %v335 = vrot.slane %v280, 1
        %v336 = vrot.slane %v281, 1
        %v337 = vsel %vm334, %v335, %v336
        %v338 = vrot.slane %v282, 1
        %v339 = vsel %vm334, %v336, %v338
        %v340 = vrot.slane %v283, 1
        %v341 = vrot.slane %v284, 1
        %v342 = vsel %vm334, %v340, %v341
        %v343 = vrot.slane %v285, 1
        %v344 = vsel %vm334, %v341, %v343
        %v345 = vrot.slane %v286, 1
        %v346 = vrot.slane %v287, 1
        %v347 = vsel %vm334, %v345, %v346
        %v348 = vrot.slane %v288, 1
        %v349 = vsel %vm334, %v346, %v348
        %v350 = vrot.slane %v289, 1
        %v351 = vrot.slane %v290, 1
        %v352 = vsel %vm334, %v350, %v351
        %v353 = vrot.slane %v291, 1
        %v354 = vsel %vm334, %v351, %v353
        %v355 = vrot.slane %v292, 1
        %v356 = vrot.slane %v293, 1
        %v357 = vsel %vm334, %v355, %v356
        %v358 = vrot.slane %v294, 1
        %v359 = vsel %vm334, %v356, %v358
        %v360 = vrot.slane %v295, 1
        %v361 = vrot.slane %v296, 1
        %v362 = vsel %vm334, %v360, %v361
        %v363 = vrot.slane %v297, 1
        %v364 = vsel %vm334, %v361, %v363
        %v365 = vrot.slane %v298, 1
        %v366 = vrot.slane %v299, 1
        %v367 = vsel %vm334, %v365, %v366
        %v368 = vrot.slane %v300, 1
        %v369 = vsel %vm334, %v366, %v368
        %v370 = vrot.slane %v301, 1
        %v371 = vrot.slane %v302, 1
        %v372 = vsel %vm334, %v370, %v371
        %v373 = vrot.slane %v303, 1
        %v374 = vsel %vm334, %v371, %v373
        %vm375 = vcmask 1045504
        %v376 = vrot.slane %v280, 2
        %v377 = vrot.slane %v281, 2
        %v378 = vsel %vm375, %v376, %v377
        %v379 = vrot.slane %v282, 2
        %v380 = vsel %vm375, %v377, %v379
        %v381 = vrot.slane %v283, 2
        %v382 = vrot.slane %v284, 2
        %v383 = vsel %vm375, %v381, %v382
        %v384 = vrot.slane %v285, 2
        %v385 = vsel %vm375, %v382, %v384
        %v386 = vrot.slane %v286, 2
        %v387 = vrot.slane %v287, 2
        %v388 = vsel %vm375, %v386, %v387
        %v389 = vrot.slane %v288, 2
        %v390 = vsel %vm375, %v387, %v389
        %v391 = vrot.slane %v289, 2
        %v392 = vrot.slane %v290, 2
        %v393 = vsel %vm375, %v391, %v392
        %v394 = vrot.slane %v291, 2
        %v395 = vsel %vm375, %v392, %v394
        %v396 = vrot.slane %v292, 2
        %v397 = vrot.slane %v293, 2
        %v398 = vsel %vm375, %v396, %v397
        %v399 = vrot.slane %v294, 2
        %v400 = vsel %vm375, %v397, %v399
        %v401 = vrot.slane %v295, 2
        %v402 = vrot.slane %v296, 2
        %v403 = vsel %vm375, %v401, %v402
        %v404 = vrot.slane %v297, 2
        %v405 = vsel %vm375, %v402, %v404
        %v406 = vrot.slane %v298, 2
        %v407 = vrot.slane %v299, 2
        %v408 = vsel %vm375, %v406, %v407
        %v409 = vrot.slane %v300, 2
        %v410 = vsel %vm375, %v407, %v409
        %v411 = vrot.slane %v301, 2
        %v412 = vrot.slane %v302, 2
        %v413 = vsel %vm375, %v411, %v412
        %v414 = vrot.slane %v303, 2
        %v415 = vsel %vm375, %v412, %v414
        %v419 = vrot.slane %v304, 1
        %v420 = vrot.slane %v305, 1
        %v421 = vsel %vm334, %v419, %v420
        %v422 = vrot.slane %v306, 1
        %v423 = vsel %vm334, %v420, %v422
        %v424 = vrot.slane %v304, 2
        %v425 = vrot.slane %v305, 2
        %v426 = vsel %vm375, %v424, %v425
        %v427 = vrot.slane %v306, 2
        %v428 = vsel %vm375, %v425, %v427
        %v432 = vrot.slane %v307, 1
        %v433 = vrot.slane %v308, 1
        %v434 = vsel %vm334, %v432, %v433
        %v435 = vrot.slane %v309, 1
        %v436 = vsel %vm334, %v433, %v435
        %v437 = vrot.slane %v307, 2
        %v438 = vrot.slane %v308, 2
        %v439 = vsel %vm375, %v437, %v438
        %v440 = vrot.slane %v309, 2
        %v441 = vsel %vm375, %v438, %v440
        %442 = vrot.lane.b32.xlu0 %v337, 4
        %v443 = vpop.permute.xlu0 %442
        %444 = vrot.lane.b32.xlu0 %v339, 4
        %v445 = vpop.permute.xlu0 %444
        %446 = vrot.lane.b32.xlu0 %v342, 4
        %v447 = vpop.permute.xlu0 %446
        %448 = vrot.lane.b32.xlu0 %v344, 4
        %v449 = vpop.permute.xlu0 %448
        %450 = vrot.lane.b32.xlu0 %v347, 4
        %v451 = vpop.permute.xlu0 %450
        %452 = vrot.lane.b32.xlu0 %v349, 4
        %v453 = vpop.permute.xlu0 %452
        %454 = vrot.lane.b32.xlu0 %v352, 4
        %v455 = vpop.permute.xlu0 %454
        %456 = vrot.lane.b32.xlu0 %v354, 4
        %v457 = vpop.permute.xlu0 %456
        %458 = vrot.lane.b32.xlu0 %v357, 4
        %v459 = vpop.permute.xlu0 %458
        %460 = vrot.lane.b32.xlu0 %v359, 4
        %v461 = vpop.permute.xlu0 %460
        %462 = vrot.lane.b32.xlu0 %v362, 4
        %v463 = vpop.permute.xlu0 %462
        %464 = vrot.lane.b32.xlu0 %v364, 4
        %v465 = vpop.permute.xlu0 %464
        %466 = vrot.lane.b32.xlu0 %v367, 4
        %v467 = vpop.permute.xlu0 %466
        %468 = vrot.lane.b32.xlu0 %v369, 4
        %v469 = vpop.permute.xlu0 %468
        %470 = vrot.lane.b32.xlu0 %v372, 4
        %v471 = vpop.permute.xlu0 %470
        %472 = vrot.lane.b32.xlu0 %v374, 4
        %v473 = vpop.permute.xlu0 %472
        %490 = vrot.lane.b32.xlu0 %v378, 8
        %v491 = vpop.permute.xlu0 %490
        %492 = vrot.lane.b32.xlu0 %v380, 8
        %v493 = vpop.permute.xlu0 %492
        %494 = vrot.lane.b32.xlu0 %v383, 8
        %v495 = vpop.permute.xlu0 %494
        %496 = vrot.lane.b32.xlu0 %v385, 8
        %v497 = vpop.permute.xlu0 %496
        %498 = vrot.lane.b32.xlu0 %v388, 8
        %v499 = vpop.permute.xlu0 %498
        %500 = vrot.lane.b32.xlu0 %v390, 8
        %v501 = vpop.permute.xlu0 %500
        %502 = vrot.lane.b32.xlu0 %v393, 8
        %v503 = vpop.permute.xlu0 %502
        %504 = vrot.lane.b32.xlu0 %v395, 8
        %v505 = vpop.permute.xlu0 %504
        %506 = vrot.lane.b32.xlu0 %v398, 8
        %v507 = vpop.permute.xlu0 %506
        %508 = vrot.lane.b32.xlu0 %v400, 8
        %v509 = vpop.permute.xlu0 %508
        %510 = vrot.lane.b32.xlu0 %v403, 8
        %v511 = vpop.permute.xlu0 %510
        %512 = vrot.lane.b32.xlu0 %v405, 8
        %v513 = vpop.permute.xlu0 %512
        %514 = vrot.lane.b32.xlu0 %v408, 8
        %v515 = vpop.permute.xlu0 %514
        %516 = vrot.lane.b32.xlu0 %v410, 8
        %v517 = vpop.permute.xlu0 %516
        %518 = vrot.lane.b32.xlu0 %v413, 8
        %v519 = vpop.permute.xlu0 %518
        %520 = vrot.lane.b32.xlu0 %v415, 8
        %v521 = vpop.permute.xlu0 %520
        %538 = vrot.lane.b32.xlu0 %v283, 12
        %v539 = vpop.permute.xlu0 %538
        %540 = vrot.lane.b32.xlu0 %v284, 12
        %v541 = vpop.permute.xlu0 %540
        %542 = vrot.lane.b32.xlu0 %v286, 12
        %v543 = vpop.permute.xlu0 %542
        %544 = vrot.lane.b32.xlu0 %v287, 12
        %v545 = vpop.permute.xlu0 %544
        %546 = vrot.lane.b32.xlu0 %v289, 12
        %v547 = vpop.permute.xlu0 %546
        %548 = vrot.lane.b32.xlu0 %v290, 12
        %v549 = vpop.permute.xlu0 %548
        %550 = vrot.lane.b32.xlu0 %v292, 12
        %v551 = vpop.permute.xlu0 %550
        %552 = vrot.lane.b32.xlu0 %v293, 12
        %v553 = vpop.permute.xlu0 %552
        %554 = vrot.lane.b32.xlu0 %v295, 12
        %v555 = vpop.permute.xlu0 %554
        %556 = vrot.lane.b32.xlu0 %v296, 12
        %v557 = vpop.permute.xlu0 %556
        %558 = vrot.lane.b32.xlu0 %v298, 12
        %v559 = vpop.permute.xlu0 %558
        %560 = vrot.lane.b32.xlu0 %v299, 12
        %v561 = vpop.permute.xlu0 %560
        %562 = vrot.lane.b32.xlu0 %v301, 12
        %v563 = vpop.permute.xlu0 %562
        %564 = vrot.lane.b32.xlu0 %v302, 12
        %v565 = vpop.permute.xlu0 %564
        %566 = vrot.lane.b32.xlu0 %v304, 12
        %v567 = vpop.permute.xlu0 %566
        %568 = vrot.lane.b32.xlu0 %v305, 12
        %v569 = vpop.permute.xlu0 %568
        %586 = vrot.lane.b32.xlu0 %v342, 16
        %v587 = vpop.permute.xlu0 %586
        %588 = vrot.lane.b32.xlu0 %v344, 16
        %v589 = vpop.permute.xlu0 %588
        %590 = vrot.lane.b32.xlu0 %v347, 16
        %v591 = vpop.permute.xlu0 %590
        %592 = vrot.lane.b32.xlu0 %v349, 16
        %v593 = vpop.permute.xlu0 %592
        %594 = vrot.lane.b32.xlu0 %v352, 16
        %v595 = vpop.permute.xlu0 %594
        %596 = vrot.lane.b32.xlu0 %v354, 16
        %v597 = vpop.permute.xlu0 %596
        %598 = vrot.lane.b32.xlu0 %v357, 16
        %v599 = vpop.permute.xlu0 %598
        %600 = vrot.lane.b32.xlu0 %v359, 16
        %v601 = vpop.permute.xlu0 %600
        %602 = vrot.lane.b32.xlu0 %v362, 16
        %v603 = vpop.permute.xlu0 %602
        %604 = vrot.lane.b32.xlu0 %v364, 16
        %v605 = vpop.permute.xlu0 %604
        %606 = vrot.lane.b32.xlu0 %v367, 16
        %v607 = vpop.permute.xlu0 %606
        %608 = vrot.lane.b32.xlu0 %v369, 16
        %v609 = vpop.permute.xlu0 %608
        %610 = vrot.lane.b32.xlu0 %v372, 16
        %v611 = vpop.permute.xlu0 %610
        %612 = vrot.lane.b32.xlu0 %v374, 16
        %v613 = vpop.permute.xlu0 %612
        %614 = vrot.lane.b32.xlu0 %v421, 16
        %v615 = vpop.permute.xlu0 %614
        %616 = vrot.lane.b32.xlu0 %v423, 16
        %v617 = vpop.permute.xlu0 %616
        %634 = vrot.lane.b32.xlu0 %v383, 20
        %v635 = vpop.permute.xlu0 %634
        %636 = vrot.lane.b32.xlu0 %v385, 20
        %v637 = vpop.permute.xlu0 %636
        %638 = vrot.lane.b32.xlu0 %v388, 20
        %v639 = vpop.permute.xlu0 %638
        %640 = vrot.lane.b32.xlu0 %v390, 20
        %v641 = vpop.permute.xlu0 %640
        %642 = vrot.lane.b32.xlu0 %v393, 20
        %v643 = vpop.permute.xlu0 %642
        %644 = vrot.lane.b32.xlu0 %v395, 20
        %v645 = vpop.permute.xlu0 %644
        %646 = vrot.lane.b32.xlu0 %v398, 20
        %v647 = vpop.permute.xlu0 %646
        %648 = vrot.lane.b32.xlu0 %v400, 20
        %v649 = vpop.permute.xlu0 %648
        %650 = vrot.lane.b32.xlu0 %v403, 20
        %v651 = vpop.permute.xlu0 %650
        %652 = vrot.lane.b32.xlu0 %v405, 20
        %v653 = vpop.permute.xlu0 %652
        %654 = vrot.lane.b32.xlu0 %v408, 20
        %v655 = vpop.permute.xlu0 %654
        %656 = vrot.lane.b32.xlu0 %v410, 20
        %v657 = vpop.permute.xlu0 %656
        %658 = vrot.lane.b32.xlu0 %v413, 20
        %v659 = vpop.permute.xlu0 %658
        %660 = vrot.lane.b32.xlu0 %v415, 20
        %v661 = vpop.permute.xlu0 %660
        %662 = vrot.lane.b32.xlu0 %v426, 20
        %v663 = vpop.permute.xlu0 %662
        %664 = vrot.lane.b32.xlu0 %v428, 20
        %v665 = vpop.permute.xlu0 %664
        %682 = vrot.lane.b32.xlu0 %v286, 24
        %v683 = vpop.permute.xlu0 %682
        %684 = vrot.lane.b32.xlu0 %v287, 24
        %v685 = vpop.permute.xlu0 %684
        %686 = vrot.lane.b32.xlu0 %v289, 24
        %v687 = vpop.permute.xlu0 %686
        %688 = vrot.lane.b32.xlu0 %v290, 24
        %v689 = vpop.permute.xlu0 %688
        %690 = vrot.lane.b32.xlu0 %v292, 24
        %v691 = vpop.permute.xlu0 %690
        %692 = vrot.lane.b32.xlu0 %v293, 24
        %v693 = vpop.permute.xlu0 %692
        %694 = vrot.lane.b32.xlu0 %v295, 24
        %v695 = vpop.permute.xlu0 %694
        %696 = vrot.lane.b32.xlu0 %v296, 24
        %v697 = vpop.permute.xlu0 %696
        %698 = vrot.lane.b32.xlu0 %v298, 24
        %v699 = vpop.permute.xlu0 %698
        %700 = vrot.lane.b32.xlu0 %v299, 24
        %v701 = vpop.permute.xlu0 %700
        %702 = vrot.lane.b32.xlu0 %v301, 24
        %v703 = vpop.permute.xlu0 %702
        %704 = vrot.lane.b32.xlu0 %v302, 24
        %v705 = vpop.permute.xlu0 %704
        %706 = vrot.lane.b32.xlu0 %v304, 24
        %v707 = vpop.permute.xlu0 %706
        %708 = vrot.lane.b32.xlu0 %v305, 24
        %v709 = vpop.permute.xlu0 %708
        %710 = vrot.lane.b32.xlu0 %v307, 24
        %v711 = vpop.permute.xlu0 %710
        %712 = vrot.lane.b32.xlu0 %v308, 24
        %v713 = vpop.permute.xlu0 %712
        %730 = vrot.lane.b32.xlu0 %v347, 28
        %v731 = vpop.permute.xlu0 %730
        %732 = vrot.lane.b32.xlu0 %v349, 28
        %v733 = vpop.permute.xlu0 %732
        %734 = vrot.lane.b32.xlu0 %v352, 28
        %v735 = vpop.permute.xlu0 %734
        %736 = vrot.lane.b32.xlu0 %v354, 28
        %v737 = vpop.permute.xlu0 %736
        %738 = vrot.lane.b32.xlu0 %v357, 28
        %v739 = vpop.permute.xlu0 %738
        %740 = vrot.lane.b32.xlu0 %v359, 28
        %v741 = vpop.permute.xlu0 %740
        %742 = vrot.lane.b32.xlu0 %v362, 28
        %v743 = vpop.permute.xlu0 %742
        %744 = vrot.lane.b32.xlu0 %v364, 28
        %v745 = vpop.permute.xlu0 %744
        %746 = vrot.lane.b32.xlu0 %v367, 28
        %v747 = vpop.permute.xlu0 %746
        %748 = vrot.lane.b32.xlu0 %v369, 28
        %v749 = vpop.permute.xlu0 %748
        %750 = vrot.lane.b32.xlu0 %v372, 28
        %v751 = vpop.permute.xlu0 %750
        %752 = vrot.lane.b32.xlu0 %v374, 28
        %v753 = vpop.permute.xlu0 %752
        %754 = vrot.lane.b32.xlu0 %v421, 28
        %v755 = vpop.permute.xlu0 %754
        %756 = vrot.lane.b32.xlu0 %v423, 28
        %v757 = vpop.permute.xlu0 %756
        %758 = vrot.lane.b32.xlu0 %v434, 28
        %v759 = vpop.permute.xlu0 %758
        %760 = vrot.lane.b32.xlu0 %v436, 28
        %v761 = vpop.permute.xlu0 %760
        %778 = vrot.lane.b32.xlu0 %v388, 32
        %v779 = vpop.permute.xlu0 %778
        %780 = vrot.lane.b32.xlu0 %v390, 32
        %v781 = vpop.permute.xlu0 %780
        %782 = vrot.lane.b32.xlu0 %v393, 32
        %v783 = vpop.permute.xlu0 %782
        %784 = vrot.lane.b32.xlu0 %v395, 32
        %v785 = vpop.permute.xlu0 %784
        %786 = vrot.lane.b32.xlu0 %v398, 32
        %v787 = vpop.permute.xlu0 %786
        %788 = vrot.lane.b32.xlu0 %v400, 32
        %v789 = vpop.permute.xlu0 %788
        %790 = vrot.lane.b32.xlu0 %v403, 32
        %v791 = vpop.permute.xlu0 %790
        %792 = vrot.lane.b32.xlu0 %v405, 32
        %v793 = vpop.permute.xlu0 %792
        %794 = vrot.lane.b32.xlu0 %v408, 32
        %v795 = vpop.permute.xlu0 %794
        %796 = vrot.lane.b32.xlu0 %v410, 32
        %v797 = vpop.permute.xlu0 %796
        %798 = vrot.lane.b32.xlu0 %v413, 32
        %v799 = vpop.permute.xlu0 %798
        %800 = vrot.lane.b32.xlu0 %v415, 32
        %v801 = vpop.permute.xlu0 %800
        %802 = vrot.lane.b32.xlu0 %v426, 32
        %v803 = vpop.permute.xlu0 %802
        %804 = vrot.lane.b32.xlu0 %v428, 32
        %v805 = vpop.permute.xlu0 %804
        %806 = vrot.lane.b32.xlu0 %v439, 32
        %v807 = vpop.permute.xlu0 %806
        %808 = vrot.lane.b32.xlu0 %v441, 32
        %v809 = vpop.permute.xlu0 %808
        %vm826 = vcmask 31744
        %v827 = vsel %vm826, %v280, %v443
        %v828 = vsel %vm826, %v281, %v445
        %v829 = vsel %vm826, %v283, %v447
        %v830 = vsel %vm826, %v284, %v449
        %v831 = vsel %vm826, %v286, %v451
        %v832 = vsel %vm826, %v287, %v453
        %v833 = vsel %vm826, %v289, %v455
        %v834 = vsel %vm826, %v290, %v457
        %v835 = vsel %vm826, %v292, %v459
        %v836 = vsel %vm826, %v293, %v461
        %v837 = vsel %vm826, %v295, %v463
        %v838 = vsel %vm826, %v296, %v465
        %v839 = vsel %vm826, %v298, %v467
        %v840 = vsel %vm826, %v299, %v469
        %v841 = vsel %vm826, %v301, %v471
        %v842 = vsel %vm826, %v302, %v473
        %vm843 = vcmask 64512
        %v844 = vsel %vm843, %v827, %v491
        %v845 = vsel %vm843, %v828, %v493
        %v846 = vsel %vm843, %v829, %v495
        %v847 = vsel %vm843, %v830, %v497
        %v848 = vsel %vm843, %v831, %v499
        %v849 = vsel %vm843, %v832, %v501
        %v850 = vsel %vm843, %v833, %v503
        %v851 = vsel %vm843, %v834, %v505
        %v852 = vsel %vm843, %v835, %v507
        %v853 = vsel %vm843, %v836, %v509
        %v854 = vsel %vm843, %v837, %v511
        %v855 = vsel %vm843, %v838, %v513
        %v856 = vsel %vm843, %v839, %v515
        %v857 = vsel %vm843, %v840, %v517
        %v858 = vsel %vm843, %v841, %v519
        %v859 = vsel %vm843, %v842, %v521
        %vm860 = vcmask 97280
        %v861 = vsel %vm860, %v844, %v539
        %v862 = vsel %vm860, %v845, %v541
        %v863 = vsel %vm860, %v846, %v543
        %v864 = vsel %vm860, %v847, %v545
        %v865 = vsel %vm860, %v848, %v547
        %v866 = vsel %vm860, %v849, %v549
        %v867 = vsel %vm860, %v850, %v551
        %v868 = vsel %vm860, %v851, %v553
        %v869 = vsel %vm860, %v852, %v555
        %v870 = vsel %vm860, %v853, %v557
        %v871 = vsel %vm860, %v854, %v559
        %v872 = vsel %vm860, %v855, %v561
        %v873 = vsel %vm860, %v856, %v563
        %v874 = vsel %vm860, %v857, %v565
        %v875 = vsel %vm860, %v858, %v567
        %v876 = vsel %vm860, %v859, %v569
        %vm877 = vcmask 130048
        %v878 = vsel %vm877, %v861, %v587
        %v879 = vsel %vm877, %v862, %v589
        %v880 = vsel %vm877, %v863, %v591
        %v881 = vsel %vm877, %v864, %v593
        %v882 = vsel %vm877, %v865, %v595
        %v883 = vsel %vm877, %v866, %v597
        %v884 = vsel %vm877, %v867, %v599
        %v885 = vsel %vm877, %v868, %v601
        %v886 = vsel %vm877, %v869, %v603
        %v887 = vsel %vm877, %v870, %v605
        %v888 = vsel %vm877, %v871, %v607
        %v889 = vsel %vm877, %v872, %v609
        %v890 = vsel %vm877, %v873, %v611
        %v891 = vsel %vm877, %v874, %v613
        %v892 = vsel %vm877, %v875, %v615
        %v893 = vsel %vm877, %v876, %v617
        %vm894 = vcmask 162816
        %v895 = vsel %vm894, %v878, %v635
        %v896 = vsel %vm894, %v879, %v637
        %v897 = vsel %vm894, %v880, %v639
        %v898 = vsel %vm894, %v881, %v641
        %v899 = vsel %vm894, %v882, %v643
        %v900 = vsel %vm894, %v883, %v645
        %v901 = vsel %vm894, %v884, %v647
        %v902 = vsel %vm894, %v885, %v649
        %v903 = vsel %vm894, %v886, %v651
        %v904 = vsel %vm894, %v887, %v653
        %v905 = vsel %vm894, %v888, %v655
        %v906 = vsel %vm894, %v889, %v657
        %v907 = vsel %vm894, %v890, %v659
        %v908 = vsel %vm894, %v891, %v661
        %v909 = vsel %vm894, %v892, %v663
        %v910 = vsel %vm894, %v893, %v665
        %vm911 = vcmask 195584
        %v912 = vsel %vm911, %v895, %v683
        %v913 = vsel %vm911, %v896, %v685
        %v914 = vsel %vm911, %v897, %v687
        %v915 = vsel %vm911, %v898, %v689
        %v916 = vsel %vm911, %v899, %v691
        %v917 = vsel %vm911, %v900, %v693
        %v918 = vsel %vm911, %v901, %v695
        %v919 = vsel %vm911, %v902, %v697
        %v920 = vsel %vm911, %v903, %v699
        %v921 = vsel %vm911, %v904, %v701
        %v922 = vsel %vm911, %v905, %v703
        %v923 = vsel %vm911, %v906, %v705
        %v924 = vsel %vm911, %v907, %v707
        %v925 = vsel %vm911, %v908, %v709
        %v926 = vsel %vm911, %v909, %v711
        %v927 = vsel %vm911, %v910, %v713
        %vm928 = vcmask 228352
        %v929 = vsel %vm928, %v912, %v731
        %v930 = vsel %vm928, %v913, %v733
        %v931 = vsel %vm928, %v914, %v735
        %v932 = vsel %vm928, %v915, %v737
        %v933 = vsel %vm928, %v916, %v739
        %v934 = vsel %vm928, %v917, %v741
        %v935 = vsel %vm928, %v918, %v743
        %v936 = vsel %vm928, %v919, %v745
        %v937 = vsel %vm928, %v920, %v747
        %v938 = vsel %vm928, %v921, %v749
        %v939 = vsel %vm928, %v922, %v751
        %v940 = vsel %vm928, %v923, %v753
        %v941 = vsel %vm928, %v924, %v755
        %v942 = vsel %vm928, %v925, %v757
        %v943 = vsel %vm928, %v926, %v759
        %v944 = vsel %vm928, %v927, %v761
        %vm945 = vcmask 261120
        %v946 = vsel %vm945, %v929, %v779
        %v947 = vsel %vm945, %v930, %v781
        %v948 = vsel %vm945, %v931, %v783
        %v949 = vsel %vm945, %v932, %v785
        %v950 = vsel %vm945, %v933, %v787
        %v951 = vsel %vm945, %v934, %v789
        %v952 = vsel %vm945, %v935, %v791
        %v953 = vsel %vm945, %v936, %v793
        %v954 = vsel %vm945, %v937, %v795
        %v955 = vsel %vm945, %v938, %v797
        %v956 = vsel %vm945, %v939, %v799
        %v957 = vsel %vm945, %v940, %v801
        %v958 = vsel %vm945, %v941, %v803
        %v959 = vsel %vm945, %v942, %v805
        %v960 = vsel %vm945, %v943, %v807
        %v961 = vsel %vm945, %v944, %v809
        %v962 = vld [vmem:[%s2] sm:$0xff]
        %v963 = vld [vmem:[%s2 + $0x8] sm:$0xff]
        %v964 = vld [vmem:[%s2 + $0x10] sm:$0xff]
        %v965 = vld [vmem:[%s2 + $0x18] sm:$0xff]
        %v966 = vld [vmem:[%s2 + $0x20] sm:$0xf]
        %vm967 = vcmask 293888
        %v969 = vsel %vm967, %v946, 0
        %v972 = vsel %vm967, %v947, 0
        %v975 = vsel %vm967, %v948, 0
        %v978 = vsel %vm967, %v949, 0
        %v981 = vsel %vm967, %v950, 0
        %v984 = vsel %vm967, %v951, 0
        %v987 = vsel %vm967, %v952, 0
        %v990 = vsel %vm967, %v953, 0
        %v993 = vsel %vm967, %v954, 0
        %v996 = vsel %vm967, %v955, 0
        %v999 = vsel %vm967, %v956, 0
        %v1002 = vsel %vm967, %v957, 0
        %v1005 = vsel %vm967, %v958, 0
        %v1008 = vsel %vm967, %v959, 0
        %v1011 = vsel %vm967, %v960, 0
        %v1014 = vsel %vm967, %v961, 0
        %vm1016 = vcmask 1043456
        %v1018 = vsel %vm1016, %v966, 0
        %1020 = vmatprep.subr.mxu0 0.0
        %1021 = vmatpush1.msra.mxu0 0.0
        %1022 = vmatprep.subr.mxu0 0.0
        %1023 = vmatpush1.msra.mxu0 0.0
        %1024 = vmatprep.subr.mxu0 0.0
        %1025 = vmatpush1.msra.mxu0 0.0
        %1026 = vmatprep.subr.mxu0 0.0
        %1027 = vmatpush1.msra.mxu0 0.0
        %1028 = vmatprep.subr.mxu0 0.0
        %1029 = vmatpush1.msra.mxu0 0.0
        %1030 = vmatprep.subr.mxu0 0.0
        %1031 = vmatpush1.msra.mxu0 0.0
        %1032 = vmatprep.subr.mxu0 0.0
        %1033 = vmatpush1.msra.mxu0 0.0
        %1034 = vmatprep.subr.mxu0 0.0
        %1035 = vmatpush1.msra.mxu0 0.0
        %1036 = vmatprep.subr.mxu0 0.0
        %1037 = vmatpush1.msra.mxu0 0.0
        %1038 = vmatprep.subr.mxu0 0.0
        %1039 = vmatpush1.msra.mxu0 0.0
        %1040 = vmatprep.subr.mxu0 0.0
        %1041 = vmatpush1.msra.mxu0 0.0
        %1042 = vmatprep.subr.mxu0 0.0
        %1043 = vmatpush1.msra.mxu0 %v1018
        %1044 = vmatprep.subr.mxu0 0.0
        %1045 = vmatpush1.msra.mxu0 %v965
        %1046 = vmatprep.subr.mxu0 0.0
        %1047 = vmatpush1.msra.mxu0 %v964
        %1048 = vmatprep.subr.mxu0 0.0
        %1049 = vmatpush1.msra.mxu0 %v963
        %1050 = vmatprep.subr.mxu0 0.0
        %1051 = vmatpush1.msra.mxu0 %v962
        %1052 = vmatprep.subr.mxu0 0.0
        %1053 = vmatpush2.msra.mxu0 0.0
        %1054 = vmatprep.subr.mxu0 0.0
        %1055 = vmatpush2.msra.mxu0 0.0
        %1056 = vmatprep.subr.mxu0 0.0
        %1057 = vmatpush2.msra.mxu0 0.0
        %1058 = vmatprep.subr.mxu0 0.0
        %1059 = vmatpush2.msra.mxu0 0.0
        %1060 = vmatprep.subr.mxu0 0.0
        %1061 = vmatpush2.msra.mxu0 0.0
        %1062 = vmatprep.subr.mxu0 0.0
        %1063 = vmatpush2.msra.mxu0 0.0
        %1064 = vmatprep.subr.mxu0 0.0
        %1065 = vmatpush2.msra.mxu0 0.0
        %1066 = vmatprep.subr.mxu0 0.0
        %1067 = vmatpush2.msra.mxu0 0.0
        %1068 = vmatprep.subr.mxu0 0.0
        %1069 = vmatpush2.msra.mxu0 0.0
        %1070 = vmatprep.subr.mxu0 0.0
        %1071 = vmatpush2.msra.mxu0 0.0
        %1072 = vmatprep.subr.mxu0 0.0
        %1073 = vmatpush2.msra.mxu0 0.0
        %1074 = vmatprep.subr.mxu0 0.0
        %1075 = vmatpush2.msra.mxu0 0.0
        %1076 = vmatprep.subr.mxu0 0.0
        %1077 = vmatpush2.msra.mxu0 0.0
        %1078 = vmatprep.subr.mxu0 0.0
        %1079 = vmatpush2.msra.mxu0 0.0
        %1080 = vmatprep.subr.mxu0 0.0
        %1081 = vmatpush2.msra.mxu0 0.0
        %1082 = vmatprep.subr.mxu0 0.0
        %1083 = vmatpush2.msra.mxu0 0.0
        %1084 = vmatprep.mubr.f32.mxu0 0.0
        %1085 = vmatmul.mubr.f32.gmra.mxu0 %v969
        %v1086 = vpop.f32.mrf.mxu0
        %v1087 = vadd.f32 0.0, %v1086
        %v1088 = vpop.f32.mrf.mxu0
        %1089 = vmatprep.mubr.f32.mxu0 0.0
        %1090 = vmatmul.mubr.f32.gmra.mxu0 %v972
        %v1091 = vpop.f32.mrf.mxu0
        %v1092 = vadd.f32 0.0, %v1091
        %v1093 = vpop.f32.mrf.mxu0
        %1094 = vmatprep.mubr.f32.mxu0 0.0
        %1095 = vmatmul.mubr.f32.gmra.mxu0 %v975
        %v1096 = vpop.f32.mrf.mxu0
        %v1097 = vadd.f32 0.0, %v1096
        %v1098 = vpop.f32.mrf.mxu0
        %1099 = vmatprep.mubr.f32.mxu0 0.0
        %1100 = vmatmul.mubr.f32.gmra.mxu0 %v978
        %v1101 = vpop.f32.mrf.mxu0
        %v1102 = vadd.f32 0.0, %v1101
        %v1103 = vpop.f32.mrf.mxu0
        %1104 = vmatprep.mubr.f32.mxu0 0.0
        %1105 = vmatmul.mubr.f32.gmra.mxu0 %v981
        %v1106 = vpop.f32.mrf.mxu0
        %v1107 = vadd.f32 0.0, %v1106
        %v1108 = vpop.f32.mrf.mxu0
        %1109 = vmatprep.mubr.f32.mxu0 0.0
        %1110 = vmatmul.mubr.f32.gmra.mxu0 %v984
        %v1111 = vpop.f32.mrf.mxu0
        %v1112 = vadd.f32 0.0, %v1111
        %v1113 = vpop.f32.mrf.mxu0
        %1114 = vmatprep.mubr.f32.mxu0 0.0
        %1115 = vmatmul.mubr.f32.gmra.mxu0 %v987
        %v1116 = vpop.f32.mrf.mxu0
        %v1117 = vadd.f32 0.0, %v1116
        %v1118 = vpop.f32.mrf.mxu0
        %1119 = vmatprep.mubr.f32.mxu0 0.0
        %1120 = vmatmul.mubr.f32.gmra.mxu0 %v990
        %v1121 = vpop.f32.mrf.mxu0
        %v1122 = vadd.f32 0.0, %v1121
        %v1123 = vpop.f32.mrf.mxu0
        %1124 = vmatprep.mubr.f32.mxu0 0.0
        %1125 = vmatmul.mubr.f32.gmra.mxu0 %v993
        %v1126 = vpop.f32.mrf.mxu0
        %v1127 = vadd.f32 0.0, %v1126
        %v1128 = vpop.f32.mrf.mxu0
        %1129 = vmatprep.mubr.f32.mxu0 0.0
        %1130 = vmatmul.mubr.f32.gmra.mxu0 %v996
        %v1131 = vpop.f32.mrf.mxu0
        %v1132 = vadd.f32 0.0, %v1131
        %v1133 = vpop.f32.mrf.mxu0
        %1134 = vmatprep.mubr.f32.mxu0 0.0
        %1135 = vmatmul.mubr.f32.gmra.mxu0 %v999
        %v1136 = vpop.f32.mrf.mxu0
        %v1137 = vadd.f32 0.0, %v1136
        %v1138 = vpop.f32.mrf.mxu0
        %1139 = vmatprep.mubr.f32.mxu0 0.0
        %1140 = vmatmul.mubr.f32.gmra.mxu0 %v1002
        %v1141 = vpop.f32.mrf.mxu0
        %v1142 = vadd.f32 0.0, %v1141
        %v1143 = vpop.f32.mrf.mxu0
        %1144 = vmatprep.mubr.f32.mxu0 0.0
        %1145 = vmatmul.mubr.f32.gmra.mxu0 %v1005
        %v1146 = vpop.f32.mrf.mxu0
        %v1147 = vadd.f32 0.0, %v1146
        %v1148 = vpop.f32.mrf.mxu0
        %1149 = vmatprep.mubr.f32.mxu0 0.0
        %1150 = vmatmul.mubr.f32.gmra.mxu0 %v1008
        %v1151 = vpop.f32.mrf.mxu0
        %v1152 = vadd.f32 0.0, %v1151
        %v1153 = vpop.f32.mrf.mxu0
        %1154 = vmatprep.mubr.f32.mxu0 0.0
        %1155 = vmatmul.mubr.f32.gmra.mxu0 %v1011
        %v1156 = vpop.f32.mrf.mxu0
        %v1157 = vadd.f32 0.0, %v1156
        %v1158 = vpop.f32.mrf.mxu0
        %1159 = vmatprep.mubr.f32.mxu0 0.0
        %1160 = vmatmul.mubr.f32.gmra.mxu0 %v1014
        %v1161 = vpop.f32.mrf.mxu0
        %v1162 = vadd.f32 0.0, %v1161
        %v1163 = vpop.f32.mrf.mxu0
        %1164 = vdwg.mxu0
        %1165 = vxpose.xlu0.b32.start [1/16] %v1087, 128
        %1166 = vxpose.xlu0.b32.cont [2/16] %v1092, 128
        %1167 = vxpose.xlu0.b32.cont [3/16] %v1097, 128
        %1168 = vxpose.xlu0.b32.cont [4/16] %v1102, 128
        %1169 = vxpose.xlu0.b32.cont [5/16] %v1107, 128
        %1170 = vxpose.xlu0.b32.cont [6/16] %v1112, 128
        %1171 = vxpose.xlu0.b32.cont [7/16] %v1117, 128
        %1172 = vxpose.xlu0.b32.cont [8/16] %v1122, 128
        %1173 = vxpose.xlu0.b32.cont [9/16] %v1127, 128
        %1174 = vxpose.xlu0.b32.cont [10/16] %v1132, 128
        %1175 = vxpose.xlu0.b32.cont [11/16] %v1137, 128
        %1176 = vxpose.xlu0.b32.cont [12/16] %v1142, 128
        %1177 = vxpose.xlu0.b32.cont [13/16] %v1147, 128
        %1178 = vxpose.xlu0.b32.cont [14/16] %v1152, 128
        %1179 = vxpose.xlu0.b32.cont [15/16] %v1157, 128
        %1180 = vxpose.xlu0.b32.end [16/16] %v1162, 128
        %v1181 = vpop.trf.xlu0
        %v1182 = vpop.trf.xlu0
        %v1183 = vpop.trf.xlu0
        %v1184 = vpop.trf.xlu0
        %v1185 = vpop.trf.xlu0
        %v1186 = vpop.trf.xlu0
        %v1187 = vpop.trf.xlu0
        %v1188 = vpop.trf.xlu0
        %v1189 = vpop.trf.xlu0
        %v1190 = vpop.trf.xlu0
        %v1191 = vpop.trf.xlu0
        %v1192 = vpop.trf.xlu0
        %v1193 = vpop.trf.xlu0
        %v1194 = vpop.trf.xlu0
        %v1195 = vpop.trf.xlu0
        %v1196 = vpop.trf.xlu0
        %1197 = vst [vmem:[%s243] sm:$0xff] %v1181
        %s1198 = sand.u32 %s120, 1
        %s1199 = scalar_lea.sflag [#allocation3], %s1198
        %s1200 = sand.u32 %s120, 1
        %s1201 = smul.addr %s1200, 8
        %s1202 = scalar_lea.vmem [#allocation2], %s1201
        // Predicated region
        $region33: #{tpu_custom_call.1} parent=31 // pred_check
          %p1203 = pneg %p130
        $region34: #{tpu_custom_call.1} parent=31 // pred_check_branch
          %1205 = sbr.rel (%p1203) target = $region36
        $region35: #{tpu_custom_call.1} parent=31 // pred_region
          %s1207 = ssub.s32 128, 128
          %1208 = vsyncadd %s1199, %s1207
          %s1209 = smul.addr %s21, 2
          %s1210 = sadd.s32 %s22, %s1209
          %s1211 = smul.addr %s1210, 128
          %s1212 = scalar_lea.hbm %s3, %s1211
          %s1214 = sshll.u32 %s1202, 4
          %s1215 = int_to_ptr.vmem [resolvable:$true] %s1214
          %1217 = dma.vmem_to_hbm [thread:$0]  %s1215, 128, %s1212, %s1199
        $region36: #{tpu_custom_call.1} parent=31 // pred_fallthru
          _
      $region32: #{tpu_custom_call.1} parent=5 // pred_fallthru
        _
      %p1218 = scmp.le.s32.totalorder 2, %s12
      // Predicated region
      $region37: #{tpu_custom_call.1} parent=5 // pred_check
        %p1219 = pneg %p1218
      $region38: #{tpu_custom_call.1} parent=5 // pred_check_branch
        %1221 = sbr.rel (%p1219) target = $region40
      $region39: #{tpu_custom_call.1} parent=5 // pred_region
        %s1222 = ssub.s32 %s12, 2
        // Predicated region
        $region41: #{tpu_custom_call.1} parent=39 // pred_check
          %p1223 = pneg %p136
        $region42: #{tpu_custom_call.1} parent=39 // pred_check_branch
          %1225 = sbr.rel (%p1223) target = $region44
        $region43: #{tpu_custom_call.1} parent=39 // pred_region
          %s1226 = sand.u32 %s121, 1
          %s1227 = scalar_lea.sflag [#allocation3], %s1226
          %s1228 = sand.u32 %s121, 1
          %s1229 = smul.addr %s1228, 8
          %s1230 = scalar_lea.vmem [#allocation2], %s1229
          %1231 = dma.done %s1227, 128
        $region44: #{tpu_custom_call.1} parent=39 // pred_fallthru
          _
      $region40: #{tpu_custom_call.1} parent=5 // pred_fallthru
        _
    $region6: #{tpu_custom_call.1} parent=1 // loop_footer
      %s16 = sadd.s32 1, %s12
    $region7: #{tpu_custom_call.1} parent=1 // loop_footer_branch
      %11 = sbr.rel target = $region3
    $region8: #{tpu_custom_call.1} parent=1 // loop_exit
      _
    %1232 = vsyncpa [#allocation3], 1
    %s1233 = scalar_lea.sflag [#allocation3], 1
    %1234 = vsyncpa %s1233, 1

</llo_original>
